<compile_context>
chip_gen: v6e
topology: v6e:2x2x1
jax: 0.10.0
libtpu: 0.0.40
codegen_flags: <defaults>
</compile_context>

<pallas_src>
import functools

import jax
import jax.numpy as jnp
from jax.experimental import pallas as pl
from jax.experimental.pallas import tpu as pltpu


def _round_up(x, m):
    return ((x + m - 1) // m) * m


def _hybrid_cbm_kernel(emb_ref, cavs_s_ref, icpt_ref, wc_t_ref, wr_t_ref,
                       bias_ref, out_ref, dist_ref):
    emb = emb_ref[...]                                   # (TB, D), compute dtype

    # Concept margins; 1/norm is already folded into cavs_s / icpt.
    margins = jnp.dot(emb, cavs_s_ref[...],
                      preferred_element_type=jnp.float32) + icpt_ref[...]
    dist_ref[...] = margins                              # (TB, Cp) lane-dense f32 store

    cd = wc_t_ref.dtype
    concept_logits = jnp.dot(margins.astype(cd), wc_t_ref[...],
                             preferred_element_type=jnp.float32)
    residual_logits = jnp.dot(emb, wr_t_ref[...],
                              preferred_element_type=jnp.float32)
    out_ref[...] = concept_logits + residual_logits + bias_ref[...]


def prepare_hybrid_cbm_params(cavs, intercepts, norms, wc, bc, wr, br,
                              *, use_bf16=False):
    """One-time weight preprocessing: transpose, fold norms/biases, pad to lane-dense.

    Call once at model setup (not per forward) so the transposes / casts never
    hit the per-call path.
    """
    cavs = jnp.asarray(cavs, jnp.float32)                       # (C, D)
    C, D = cavs.shape
    n_classes = wc.shape[0]
    Cp = _round_up(C, 128)
    Np = _round_up(n_classes, 128)
    compute_dtype = jnp.bfloat16 if use_bf16 else jnp.float32

    inv_norm = 1.0 / jnp.asarray(norms, jnp.float32).reshape(C)            # (C,)
    icpt = jnp.asarray(intercepts, jnp.float32).reshape(C) * inv_norm      # (C,)

    cavs_s = (cavs * inv_norm[:, None]).T                                  # (D, C)
    cavs_s = jnp.pad(cavs_s, ((0, 0), (0, Cp - C)))                        # (D, Cp)
    icpt_row = jnp.pad(icpt, (0, Cp - C)).reshape(1, Cp)                   # (1, Cp)

    wc_t = jnp.pad(jnp.asarray(wc, jnp.float32).T,
                   ((0, Cp - C), (0, Np - n_classes)))                     # (Cp, Np)
    wr_t = jnp.pad(jnp.asarray(wr, jnp.float32).T,
                   ((0, 0), (0, Np - n_classes)))                          # (D, Np)
    bias = jnp.pad(jnp.asarray(bc, jnp.float32) + jnp.asarray(br, jnp.float32),
                   (0, Np - n_classes)).reshape(1, Np)                     # (1, Np)

    return {
        "cavs_s": cavs_s.astype(compute_dtype),
        "icpt": icpt_row,                          # keep f32 (epilogue adds in f32)
        "wc_t": wc_t.astype(compute_dtype),
        "wr_t": wr_t.astype(compute_dtype),
        "bias": bias,                              # keep f32
        "n_concepts": int(C),
        "n_classes": int(n_classes),
        "d_embedding": int(D),
        "compute_dtype": compute_dtype,
    }


@functools.partial(jax.jit, static_argnames=("n_concepts", "n_classes", "block_b"))
def _forward_impl(emb, cavs_s, icpt, wc_t, wr_t, bias,
                  *, n_concepts, n_classes, block_b=512):
    B, D = emb.shape
    Cp = cavs_s.shape[1]
    Np = wc_t.shape[1]
    compute_dtype = cavs_s.dtype
    itemsize = jnp.dtype(compute_dtype).itemsize

    # --- Choose batch tile: largest <= block_b that fits a ~40 MiB VMEM budget
    #     (resident weights + double-buffered emb / out / dist tiles). 40 MiB
    #     leaves headroom on v7x (64 MiB physical VMEM).
    weight_bytes = (D * Cp + Cp * Np + D * Np) * itemsize + (Cp + Np) * 4

    def _stream_bytes(tb):
        return 2 * tb * D * itemsize + 2 * tb * (Cp + Np) * 4

    TB = max(8, (min(block_b, _round_up(B, 8)) // 8) * 8)
    while TB > 8 and weight_bytes + _stream_bytes(TB) > 40 * 1024 * 1024:
        TB = max(8, TB // 2)

    Bp = _round_up(B, TB)
    emb_p = emb.astype(jnp.float32)
    if Bp > B:
        emb_p = jnp.pad(emb_p, ((0, Bp - B), (0, 0)))
    emb_p = emb_p.astype(compute_dtype)

    grid = Bp // TB
    vmem_limit = int(min(64 * 1024 * 1024,
                         max(16 * 1024 * 1024,
                             2 * (weight_bytes + _stream_bytes(TB)))))

    flops = 2 * Bp * D * Cp + 2 * Bp * Cp * Np + 2 * Bp * D * Np
    bytes_accessed = (Bp * D * itemsize + weight_bytes
                      + Bp * Np * 4 + Bp * Cp * 4)

    out_p, dist_p = pl.pallas_call(
        _hybrid_cbm_kernel,
        out_shape=(
            jax.ShapeDtypeStruct((Bp, Np), jnp.float32),
            jax.ShapeDtypeStruct((Bp, Cp), jnp.float32),
        ),
        grid_spec=pltpu.PrefetchScalarGridSpec(
            num_scalar_prefetch=0,
            grid=(grid,),
            in_specs=[
                pl.BlockSpec((TB, D), lambda i: (i, 0)),    # emb tile (streamed)
                pl.BlockSpec((D, Cp), lambda i: (0, 0)),    # cavs_s (VMEM-resident)
                pl.BlockSpec((1, Cp), lambda i: (0, 0)),    # intercepts/norm row
                pl.BlockSpec((Cp, Np), lambda i: (0, 0)),   # wc_t (VMEM-resident)
                pl.BlockSpec((D, Np), lambda i: (0, 0)),    # wr_t (VMEM-resident)
                pl.BlockSpec((1, Np), lambda i: (0, 0)),    # combined bias row
            ],
            out_specs=(
                pl.BlockSpec((TB, Np), lambda i: (i, 0)),   # class logits (padded)
                pl.BlockSpec((TB, Cp), lambda i: (i, 0)),   # dist (padded)
            ),
        ),
        compiler_params=pltpu.CompilerParams(
            dimension_semantics=("parallel",),
            vmem_limit_bytes=vmem_limit,
        ),
        cost_estimate=pl.CostEstimate(flops=int(flops), transcendentals=0,
                                      bytes_accessed=int(bytes_accessed)),
    )(emb_p, cavs_s, icpt, wc_t, wr_t, bias)

    return out_p[:B, :n_classes], dist_p[:B, :n_concepts]


def posthoc_hybrid_cbm_forward(emb, params, *, block_b=512):
    """Returns (out, dist) exactly like PosthocHybridCBM.forward(emb, return_dist=True)."""
    return _forward_impl(
        jnp.asarray(emb), params["cavs_s"], params["icpt"], params["wc_t"],
        params["wr_t"], params["bias"],
        n_concepts=params["n_concepts"], n_classes=params["n_classes"],
        block_b=block_b)


def _reference_forward(emb, cavs, intercepts, norms, wc, bc, wr, br):
    # Pure-JAX mirror of the PyTorch forward for validation.
    margins = (cavs @ emb.T + intercepts) / norms            # (C, B)
    dist = margins.T                                         # (B, C)
    out = dist @ wc.T + bc + emb @ wr.T + br                 # (B, n_classes)
    return out, dist


if __name__ == "__main__":
    # Small deterministic shapes consistent with the module.
    B = 12           # batch of embeddings (non-multiple of TB to exercise padding)
    D = 64           # d_embedding  (cavs.shape[1])
    C = 32           # n_concepts   (cavs.shape[0])
    N_CLASSES = 5

    key = jax.random.PRNGKey(0)
    k_emb, k_cav, k_ic, k_nm, k_wc, k_bc, k_wr, k_br = jax.random.split(key, 8)

    emb = jax.random.normal(k_emb, (B, D), dtype=jnp.float32)

    # ConceptBank tensors (deterministic synthetic values).
    cavs = jax.random.normal(k_cav, (C, D), dtype=jnp.float32)
    intercepts = jax.random.normal(k_ic, (C, 1), dtype=jnp.float32)
    norms = jnp.abs(jax.random.normal(k_nm, (C, 1), dtype=jnp.float32)) + 0.5

    # Bottleneck classifier: nn.Linear(C, n_classes)
    wc = jax.random.normal(k_wc, (N_CLASSES, C), dtype=jnp.float32) * 0.1
    bc = jax.random.normal(k_bc, (N_CLASSES,), dtype=jnp.float32) * 0.1
    # Residual classifier: nn.Linear(D, n_classes)
    wr = jax.random.normal(k_wr, (N_CLASSES, D), dtype=jnp.float32) * 0.1
    br = jax.random.normal(k_br, (N_CLASSES,), dtype=jnp.float32) * 0.1

    # One-time parameter preparation (f32 MXU path; set use_bf16=True on
    # v6e/v7x when looser tolerance is acceptable).
    params = prepare_hybrid_cbm_params(cavs, intercepts, norms, wc, bc, wr, br,
                                       use_bf16=False)

    out, dist = posthoc_hybrid_cbm_forward(emb, params)
    jax.block_until_ready(out)
    jax.block_until_ready(dist)

    ref_out, ref_dist = _reference_forward(emb, cavs, intercepts, norms,
                                           wc, bc, wr, br)
    assert out.shape == (B, N_CLASSES) and dist.shape == (B, C)
    # Norm-folding reorders the divide, so allow a slightly looser (still tight) tolerance.
    assert jnp.allclose(out, ref_out, atol=1e-3, rtol=1e-3)
    assert jnp.allclose(dist, ref_dist, atol=1e-3, rtol=1e-3)

    print("KERNEL_OK")
</pallas_src>

<mosaic_0001>
module attributes {stable_mosaic.version = 11 : i64} {
  func.func @_hybrid_cbm_kernel(%arg0: i32, %arg1: memref<16x64xf32, #tpu.memory_space<vmem>>, %arg2: memref<64x128xf32, #tpu.memory_space<vmem>>, %arg3: memref<1x128xf32, #tpu.memory_space<vmem>>, %arg4: memref<128x128xf32, #tpu.memory_space<vmem>>, %arg5: memref<64x128xf32, #tpu.memory_space<vmem>>, %arg6: memref<1x128xf32, #tpu.memory_space<vmem>>, %arg7: memref<16x128xf32, #tpu.memory_space<vmem>>, %arg8: memref<16x128xf32, #tpu.memory_space<vmem>>) attributes {dimension_semantics = [#tpu.dimension_semantics<parallel>], iteration_bounds = array<i64: 1>, scalar_prefetch = 0 : i64, scratch_operands = 0 : i64, tpu.core_type = #tpu.core_type<tc>, window_params = [{transform_indices = @transform_0, window_bounds = array<i64: 16, 64>}, {pipeline_mode = #tpu.pipeline_mode<synchronous>, transform_indices = @transform_1, window_bounds = array<i64: 64, 128>}, {pipeline_mode = #tpu.pipeline_mode<synchronous>, transform_indices = @transform_2, window_bounds = array<i64: 1, 128>}, {pipeline_mode = #tpu.pipeline_mode<synchronous>, transform_indices = @transform_3, window_bounds = array<i64: 128, 128>}, {pipeline_mode = #tpu.pipeline_mode<synchronous>, transform_indices = @transform_4, window_bounds = array<i64: 64, 128>}, {pipeline_mode = #tpu.pipeline_mode<synchronous>, transform_indices = @transform_5, window_bounds = array<i64: 1, 128>}, {transform_indices = @transform_6, window_bounds = array<i64: 16, 128>}, {transform_indices = @transform_7, window_bounds = array<i64: 16, 128>}]} {
    %c0 = arith.constant 0 : index
    %c0_0 = arith.constant 0 : index
    %0 = vector.load %arg1[%c0, %c0_0] : memref<16x64xf32, #tpu.memory_space<vmem>>, vector<16x64xf32>
    %c0_1 = arith.constant 0 : index
    %c0_2 = arith.constant 0 : index
    %1 = vector.load %arg2[%c0_1, %c0_2] : memref<64x128xf32, #tpu.memory_space<vmem>>, vector<64x128xf32>
    %cst = arith.constant dense<0.000000e+00> : vector<16x128xf32>
    %2 = tpu.matmul %0, %1, %cst {dimension_numbers = #tpu.dot_dimension_numbers<[1], [0], [0], [1], [0, 0, 1, 1], [], []>} : vector<16x64xf32>, vector<64x128xf32>, vector<16x128xf32> -> vector<16x128xf32>
    %c0_3 = arith.constant 0 : index
    %c0_4 = arith.constant 0 : index
    %3 = vector.load %arg3[%c0_3, %c0_4] : memref<1x128xf32, #tpu.memory_space<vmem>>, vector<1x128xf32>
    %4 = vector.broadcast %3 : vector<1x128xf32> to vector<16x128xf32>
    %5 = arith.addf %2, %4 : vector<16x128xf32>
    %c0_5 = arith.constant 0 : index
    %c0_6 = arith.constant 0 : index
    %6 = vector.load %arg8[%c0_5, %c0_6] : memref<16x128xf32, #tpu.memory_space<vmem>>, vector<16x128xf32>
    tpu.vector_store %arg8[%c0_5, %c0_6], %5 {strides = array<i32>} : memref<16x128xf32, #tpu.memory_space<vmem>>, vector<16x128xf32>,
    %c0_7 = arith.constant 0 : index
    %c0_8 = arith.constant 0 : index
    %7 = vector.load %arg4[%c0_7, %c0_8] : memref<128x128xf32, #tpu.memory_space<vmem>>, vector<128x128xf32>
    %cst_9 = arith.constant dense<0.000000e+00> : vector<16x128xf32>
    %8 = tpu.matmul %5, %7, %cst_9 {dimension_numbers = #tpu.dot_dimension_numbers<[1], [0], [0], [1], [0, 0, 1, 1], [], []>} : vector<16x128xf32>, vector<128x128xf32>, vector<16x128xf32> -> vector<16x128xf32>
    %c0_10 = arith.constant 0 : index
    %c0_11 = arith.constant 0 : index
    %9 = vector.load %arg5[%c0_10, %c0_11] : memref<64x128xf32, #tpu.memory_space<vmem>>, vector<64x128xf32>
    %cst_12 = arith.constant dense<0.000000e+00> : vector<16x128xf32>
    %10 = tpu.matmul %0, %9, %cst_12 {dimension_numbers = #tpu.dot_dimension_numbers<[1], [0], [0], [1], [0, 0, 1, 1], [], []>} : vector<16x64xf32>, vector<64x128xf32>, vector<16x128xf32> -> vector<16x128xf32>
    %11 = arith.addf %8, %10 : vector<16x128xf32>
    %c0_13 = arith.constant 0 : index
    %c0_14 = arith.constant 0 : index
    %12 = vector.load %arg6[%c0_13, %c0_14] : memref<1x128xf32, #tpu.memory_space<vmem>>, vector<1x128xf32>
    %13 = vector.broadcast %12 : vector<1x128xf32> to vector<16x128xf32>
    %14 = arith.addf %11, %13 : vector<16x128xf32>
    %c0_15 = arith.constant 0 : index
    %c0_16 = arith.constant 0 : index
    %15 = vector.load %arg7[%c0_15, %c0_16] : memref<16x128xf32, #tpu.memory_space<vmem>>, vector<16x128xf32>
    tpu.vector_store %arg7[%c0_15, %c0_16], %14 {strides = array<i32>} : memref<16x128xf32, #tpu.memory_space<vmem>>, vector<16x128xf32>,
    return
  }
  func.func @transform_0(%arg0: i32) -> (i32, i32) {
    %c0_i32 = arith.constant 0 : i32
    %c0_i32_0 = arith.constant 0 : i32
    return %arg0, %c0_i32 : i32, i32
  }
  func.func @transform_1(%arg0: i32) -> (i32, i32) {
    %c0_i32 = arith.constant 0 : i32
    %c0_i32_0 = arith.constant 0 : i32
    %c0_i32_1 = arith.constant 0 : i32
    return %c0_i32, %c0_i32_0 : i32, i32
  }
  func.func @transform_2(%arg0: i32) -> (i32, i32) {
    %c0_i32 = arith.constant 0 : i32
    %c0_i32_0 = arith.constant 0 : i32
    %c0_i32_1 = arith.constant 0 : i32
    return %c0_i32, %c0_i32_0 : i32, i32
  }
  func.func @transform_3(%arg0: i32) -> (i32, i32) {
    %c0_i32 = arith.constant 0 : i32
    %c0_i32_0 = arith.constant 0 : i32
    %c0_i32_1 = arith.constant 0 : i32
    return %c0_i32, %c0_i32_0 : i32, i32
  }
  func.func @transform_4(%arg0: i32) -> (i32, i32) {
    %c0_i32 = arith.constant 0 : i32
    %c0_i32_0 = arith.constant 0 : i32
    %c0_i32_1 = arith.constant 0 : i32
    return %c0_i32, %c0_i32_0 : i32, i32
  }
  func.func @transform_5(%arg0: i32) -> (i32, i32) {
    %c0_i32 = arith.constant 0 : i32
    %c0_i32_0 = arith.constant 0 : i32
    %c0_i32_1 = arith.constant 0 : i32
    return %c0_i32, %c0_i32_0 : i32, i32
  }
  func.func @transform_6(%arg0: i32) -> (i32, i32) {
    %c0_i32 = arith.constant 0 : i32
    %c0_i32_0 = arith.constant 0 : i32
    return %arg0, %c0_i32 : i32, i32
  }
  func.func @transform_7(%arg0: i32) -> (i32, i32) {
    %c0_i32 = arith.constant 0 : i32
    %c0_i32_0 = arith.constant 0 : i32
    return %arg0, %c0_i32 : i32, i32
  }
}

</mosaic_0001>

<llo_original>
// kernel: _forward_impl.1
$region0: #{_forward_impl.1}
  #allocation0 [shape = 'u32[]', space=smem, size = 0x4, offset = 0x4, fixed_abs, tag = 'smem constant byte address 0x4 - core index']
  #allocation1 [shape = 'u32[144,128]{1,0:T(1,128)}', space=vmem, size = 0x12000, scoped, tag = 'internal scratch']
  %s0 = inlined_call_operand.vmem [shape: f32[16,64], index: 0, kind: input, shape index: {}]
  %s1 = inlined_call_operand.hbm [shape: f32[64,128], index: 1, kind: input, shape index: {}]
  %s2 = inlined_call_operand.vmem [shape: f32[1,128], index: 2, kind: input, shape index: {}]
  %s3 = inlined_call_operand.hbm [shape: f32[128,128], index: 3, kind: input, shape index: {}]
  %s4 = inlined_call_operand.hbm [shape: f32[64,128], index: 4, kind: input, shape index: {}]
  %s5 = inlined_call_operand.vmem [shape: f32[1,128], index: 5, kind: input, shape index: {}]
  %s6 = inlined_call_operand.vmem [shape: f32[16,128], index: 6, kind: output, shape index: {0}]
  %s7 = inlined_call_operand.hbm [shape: f32[16,128], index: 7, kind: output, shape index: {1}]
  %8 = xla_tuple %s6, %s7
  %s9 = sld [smem:[#allocation0]]
  $region54: #{_forward_impl.1} parent=0
    _
  %s11 = ssub.s32 1, %s9
  %s12 = scalar_select 0, %s11, %s9
  $region1: #{_forward_impl.1} parent=0
    #allocation2 [shape = 'u8[32768]{0}', space=vmem, size = 0x8000, scoped, tag = 'input window, operand 1, single buffered']
    #allocation3 [shape = 's32[1]{0}', space=sflag, size = 0x4, scoped, tag = 'scoped memory for _forward_impl.1']
    #allocation4 [shape = 's32[1]{0}', space=sflag, size = 0x4, scoped, tag = 'scoped memory for _forward_impl.1']
    #allocation5 [shape = 'u8[65536]{0}', space=vmem, size = 0x10000, scoped, tag = 'input window, operand 3, single buffered']
    #allocation6 [shape = 's32[1]{0}', space=sflag, size = 0x4, scoped, tag = 'scoped memory for _forward_impl.1']
    #allocation7 [shape = 'u8[32768]{0}', space=vmem, size = 0x8000, scoped, tag = 'input window, operand 4, single buffered']
    #allocation8 [shape = 'u8[8192]{0}', space=vmem, size = 0x2000, scoped, tag = 'output window, operand 1, single buffered']
    %13 = vsyncpa [#allocation3], 0
    %14 = vsyncpa [#allocation6], 0
    %15 = vsyncpa [#allocation4], 0
    // Predicated region
    $region2: #{_forward_impl.1} parent=1 // pred_check
      _
    $region3: #{_forward_impl.1} parent=1 // pred_check_branch
      %17 = sbr.rel (0) target = $region5
    $region4: #{_forward_impl.1} parent=1 // pred_region
      _
    $region5: #{_forward_impl.1} parent=1 // pred_fallthru
      _
    // Predicated region
    $region6: #{_forward_impl.1} parent=1 // pred_check
      _
    $region7: #{_forward_impl.1} parent=1 // pred_check_branch
      %19 = sbr.rel (0) target = $region9
    $region8: #{_forward_impl.1} parent=1 // pred_region
      %s21 = ssub.s32 1024, 1024
      %22 = vsyncadd [#allocation3], %s21
      %s23 = sshll.u32 [#allocation2], 4
      %s24 = int_to_ptr.vmem [resolvable:$true] %s23
      %29 = dma.hbm_to_vmem [thread:$0]  %s1, 1024, %s24, [#allocation3], 128, 128, 8
    $region9: #{_forward_impl.1} parent=1 // pred_fallthru
      _
    // Predicated region
    $region10: #{_forward_impl.1} parent=1 // pred_check
      _
    $region11: #{_forward_impl.1} parent=1 // pred_check_branch
      %31 = sbr.rel (0) target = $region13
    $region12: #{_forward_impl.1} parent=1 // pred_region
      _
    $region13: #{_forward_impl.1} parent=1 // pred_fallthru
      _
    // Predicated region
    $region14: #{_forward_impl.1} parent=1 // pred_check
      _
    $region15: #{_forward_impl.1} parent=1 // pred_check_branch
      %33 = sbr.rel (0) target = $region17
    $region16: #{_forward_impl.1} parent=1 // pred_region
      %s35 = ssub.s32 2048, 2048
      %36 = vsyncadd [#allocation6], %s35
      %s37 = sshll.u32 [#allocation5], 4
      %s38 = int_to_ptr.vmem [resolvable:$true] %s37
      %43 = dma.hbm_to_vmem [thread:$0]  %s3, 2048, %s38, [#allocation6], 128, 128, 8
    $region17: #{_forward_impl.1} parent=1 // pred_fallthru
      _
    // Predicated region
    $region18: #{_forward_impl.1} parent=1 // pred_check
      _
    $region19: #{_forward_impl.1} parent=1 // pred_check_branch
      %45 = sbr.rel (0) target = $region21
    $region20: #{_forward_impl.1} parent=1 // pred_region
      %s47 = ssub.s32 1024, 1024
      %48 = vsyncadd [#allocation6], %s47
      %s49 = sshll.u32 [#allocation7], 4
      %s50 = int_to_ptr.vmem [resolvable:$true] %s49
      %55 = dma.hbm_to_vmem [thread:$0]  %s4, 1024, %s50, [#allocation6], 128, 128, 8
    $region21: #{_forward_impl.1} parent=1 // pred_fallthru
      _
    // Predicated region
    $region22: #{_forward_impl.1} parent=1 // pred_check
      _
    $region23: #{_forward_impl.1} parent=1 // pred_check_branch
      %57 = sbr.rel (0) target = $region25
    $region24: #{_forward_impl.1} parent=1 // pred_region
      _
    $region25: #{_forward_impl.1} parent=1 // pred_fallthru
      _
    // Predicated region
    $region26: #{_forward_impl.1} parent=1 // pred_check
      _
    $region27: #{_forward_impl.1} parent=1 // pred_check_branch
      %59 = sbr.rel (0) target = $region29
    $region28: #{_forward_impl.1} parent=1 // pred_region
      %60 = dma.done [#allocation3], 1024
    $region29: #{_forward_impl.1} parent=1 // pred_fallthru
      _
    // Predicated region
    $region30: #{_forward_impl.1} parent=1 // pred_check
      _
    $region31: #{_forward_impl.1} parent=1 // pred_check_branch
      %62 = sbr.rel (0) target = $region33
    $region32: #{_forward_impl.1} parent=1 // pred_region
      %63 = dma.done [#allocation6], 2048
    $region33: #{_forward_impl.1} parent=1 // pred_fallthru
      _
    // Predicated region
    $region34: #{_forward_impl.1} parent=1 // pred_check
      _
    $region35: #{_forward_impl.1} parent=1 // pred_check_branch
      %65 = sbr.rel (0) target = $region37
    $region36: #{_forward_impl.1} parent=1 // pred_region
      %66 = dma.done [#allocation6], 1024
    $region37: #{_forward_impl.1} parent=1 // pred_fallthru
      _
    %v67 = vld [vmem:[%s0] sm:$0xff]
    %v68 = vld [vmem:[%s0 + $0x8] sm:$0xff]
    %v69 = vld [vmem:[#allocation2] sm:$0xff]
    %v70 = vld [vmem:[#allocation2 + $0x8] sm:$0xff]
    %v71 = vld [vmem:[#allocation2 + $0x10] sm:$0xff]
    %v72 = vld [vmem:[#allocation2 + $0x18] sm:$0xff]
    %v73 = vld [vmem:[#allocation2 + $0x20] sm:$0xff]
    %v74 = vld [vmem:[#allocation2 + $0x28] sm:$0xff]
    %v75 = vld [vmem:[#allocation2 + $0x30] sm:$0xff]
    %v76 = vld [vmem:[#allocation2 + $0x38] sm:$0xff]
    %v77 = vld [vmem:[%s2] sm:$0x1]
    %v79 = vlaneseq
    %v80 = vshrl.u32 %v79, 7
    %v81 = vsub.s32 0, %v80
    %v82 = vrot.slane %v77, %v81
    %vm84 = vcmask 523264
    %v86 = vsel %vm84, %v67, 0
    %v89 = vsel %vm84, %v68, 0
    %91 = vmatprep.subr.mxu0 0.0
    %92 = vmatpush1.msra.mxu0 0.0
    %93 = vmatprep.subr.mxu0 0.0
    %94 = vmatpush1.msra.mxu0 0.0
    %95 = vmatprep.subr.mxu0 0.0
    %96 = vmatpush1.msra.mxu0 0.0
    %97 = vmatprep.subr.mxu0 0.0
    %98 = vmatpush1.msra.mxu0 0.0
    %99 = vmatprep.subr.mxu0 0.0
    %100 = vmatpush1.msra.mxu0 0.0
    %101 = vmatprep.subr.mxu0 0.0
    %102 = vmatpush1.msra.mxu0 0.0
    %103 = vmatprep.subr.mxu0 0.0
    %104 = vmatpush1.msra.mxu0 0.0
    %105 = vmatprep.subr.mxu0 0.0
    %106 = vmatpush1.msra.mxu0 0.0
    %107 = vmatprep.subr.mxu0 0.0
    %108 = vmatpush1.msra.mxu0 %v76
    %109 = vmatprep.subr.mxu0 0.0
    %110 = vmatpush1.msra.mxu0 %v75
    %111 = vmatprep.subr.mxu0 0.0
    %112 = vmatpush1.msra.mxu0 %v74
    %113 = vmatprep.subr.mxu0 0.0
    %114 = vmatpush1.msra.mxu0 %v73
    %115 = vmatprep.subr.mxu0 0.0
    %116 = vmatpush1.msra.mxu0 %v72
    %117 = vmatprep.subr.mxu0 0.0
    %118 = vmatpush1.msra.mxu0 %v71
    %119 = vmatprep.subr.mxu0 0.0
    %120 = vmatpush1.msra.mxu0 %v70
    %121 = vmatprep.subr.mxu0 0.0
    %122 = vmatpush1.msra.mxu0 %v69
    %123 = vmatprep.subr.mxu0 0.0
    %124 = vmatpush2.msra.mxu0 0.0
    %125 = vmatprep.subr.mxu0 0.0
    %126 = vmatpush2.msra.mxu0 0.0
    %127 = vmatprep.subr.mxu0 0.0
    %128 = vmatpush2.msra.mxu0 0.0
    %129 = vmatprep.subr.mxu0 0.0
    %130 = vmatpush2.msra.mxu0 0.0
    %131 = vmatprep.subr.mxu0 0.0
    %132 = vmatpush2.msra.mxu0 0.0
    %133 = vmatprep.subr.mxu0 0.0
    %134 = vmatpush2.msra.mxu0 0.0
    %135 = vmatprep.subr.mxu0 0.0
    %136 = vmatpush2.msra.mxu0 0.0
    %137 = vmatprep.subr.mxu0 0.0
    %138 = vmatpush2.msra.mxu0 0.0
    %139 = vmatprep.subr.mxu0 0.0
    %140 = vmatpush2.msra.mxu0 0.0
    %141 = vmatprep.subr.mxu0 0.0
    %142 = vmatpush2.msra.mxu0 0.0
    %143 = vmatprep.subr.mxu0 0.0
    %144 = vmatpush2.msra.mxu0 0.0
    %145 = vmatprep.subr.mxu0 0.0
    %146 = vmatpush2.msra.mxu0 0.0
    %147 = vmatprep.subr.mxu0 0.0
    %148 = vmatpush2.msra.mxu0 0.0
    %149 = vmatprep.subr.mxu0 0.0
    %150 = vmatpush2.msra.mxu0 0.0
    %151 = vmatprep.subr.mxu0 0.0
    %152 = vmatpush2.msra.mxu0 0.0
    %153 = vmatprep.subr.mxu0 0.0
    %154 = vmatpush2.msra.mxu0 0.0
    %155 = vmatprep.mubr.f32.mxu0 0.0
    %156 = vmatmul.mubr.f32.gmra.mxu0 %v86
    %v157 = vpop.f32.mrf.mxu0
    %v158 = vadd.f32 %v82, %v157
    %v159 = vpop.f32.mrf.mxu0
    %160 = vmatprep.mubr.f32.mxu0 0.0
    %161 = vmatmul.mubr.f32.gmra.mxu0 %v89
    %v162 = vpop.f32.mrf.mxu0
    %v163 = vadd.f32 %v82, %v162
    %v164 = vpop.f32.mrf.mxu0
    %165 = vdwg.mxu0
    %166 = vst [vmem:[#allocation8] sm:$0xff] %v158
    %167 = vst [vmem:[#allocation8 + $0x8] sm:$0xff] %v163
    %v168 = vld [vmem:[#allocation5] sm:$0xff]
    %v169 = vld [vmem:[#allocation5 + $0x8] sm:$0xff]
    %v170 = vld [vmem:[#allocation5 + $0x10] sm:$0xff]
    %v171 = vld [vmem:[#allocation5 + $0x18] sm:$0xff]
    %v172 = vld [vmem:[#allocation5 + $0x20] sm:$0xff]
    %v173 = vld [vmem:[#allocation5 + $0x28] sm:$0xff]
    %v174 = vld [vmem:[#allocation5 + $0x30] sm:$0xff]
    %v175 = vld [vmem:[#allocation5 + $0x38] sm:$0xff]
    %v176 = vld [vmem:[#allocation5 + $0x40] sm:$0xff]
    %v177 = vld [vmem:[#allocation5 + $0x48] sm:$0xff]
    %v178 = vld [vmem:[#allocation5 + $0x50] sm:$0xff]
    %v179 = vld [vmem:[#allocation5 + $0x58] sm:$0xff]
    %v180 = vld [vmem:[#allocation5 + $0x60] sm:$0xff]
    %v181 = vld [vmem:[#allocation5 + $0x68] sm:$0xff]
    %v182 = vld [vmem:[#allocation5 + $0x70] sm:$0xff]
    %v183 = vld [vmem:[#allocation5 + $0x78] sm:$0xff]
    %v184 = vld [vmem:[#allocation7] sm:$0xff]
    %v185 = vld [vmem:[#allocation7 + $0x8] sm:$0xff]
    %v186 = vld [vmem:[#allocation7 + $0x10] sm:$0xff]
    %v187 = vld [vmem:[#allocation7 + $0x18] sm:$0xff]
    %v188 = vld [vmem:[#allocation7 + $0x20] sm:$0xff]
    %v189 = vld [vmem:[#allocation7 + $0x28] sm:$0xff]
    %v190 = vld [vmem:[#allocation7 + $0x30] sm:$0xff]
    %v191 = vld [vmem:[#allocation7 + $0x38] sm:$0xff]
    %192 = vmatprep.subr.mxu0 0.0
    %193 = vmatpush1.msra.mxu0 0.0
    %194 = vmatprep.subr.mxu0 0.0
    %195 = vmatpush1.msra.mxu0 0.0
    %196 = vmatprep.subr.mxu0 0.0
    %197 = vmatpush1.msra.mxu0 0.0
    %198 = vmatprep.subr.mxu0 0.0
    %199 = vmatpush1.msra.mxu0 0.0
    %200 = vmatprep.subr.mxu0 0.0
    %201 = vmatpush1.msra.mxu0 0.0
    %202 = vmatprep.subr.mxu0 0.0
    %203 = vmatpush1.msra.mxu0 0.0
    %204 = vmatprep.subr.mxu0 0.0
    %205 = vmatpush1.msra.mxu0 0.0
    %206 = vmatprep.subr.mxu0 0.0
    %207 = vmatpush1.msra.mxu0 0.0
    %208 = vmatprep.subr.mxu0 0.0
    %209 = vmatpush1.msra.mxu0 %v191
    %210 = vmatprep.subr.mxu0 0.0
    %211 = vmatpush1.msra.mxu0 %v190
    %212 = vmatprep.subr.mxu0 0.0
    %213 = vmatpush1.msra.mxu0 %v189
    %214 = vmatprep.subr.mxu0 0.0
    %215 = vmatpush1.msra.mxu0 %v188
    %216 = vmatprep.subr.mxu0 0.0
    %217 = vmatpush1.msra.mxu0 %v187
    %218 = vmatprep.subr.mxu0 0.0
    %219 = vmatpush1.msra.mxu0 %v186
    %220 = vmatprep.subr.mxu0 0.0
    %221 = vmatpush1.msra.mxu0 %v185
    %222 = vmatprep.subr.mxu0 0.0
    %223 = vmatpush1.msra.mxu0 %v184
    %224 = vmatprep.subr.mxu0 0.0
    %225 = vmatpush2.msra.mxu0 0.0
    %226 = vmatprep.subr.mxu0 0.0
    %227 = vmatpush2.msra.mxu0 0.0
    %228 = vmatprep.subr.mxu0 0.0
    %229 = vmatpush2.msra.mxu0 0.0
    %230 = vmatprep.subr.mxu0 0.0
    %231 = vmatpush2.msra.mxu0 0.0
    %232 = vmatprep.subr.mxu0 0.0
    %233 = vmatpush2.msra.mxu0 0.0
    %234 = vmatprep.subr.mxu0 0.0
    %235 = vmatpush2.msra.mxu0 0.0
    %236 = vmatprep.subr.mxu0 0.0
    %237 = vmatpush2.msra.mxu0 0.0
    %238 = vmatprep.subr.mxu0 0.0
    %239 = vmatpush2.msra.mxu0 0.0
    %240 = vmatprep.subr.mxu0 0.0
    %241 = vmatpush2.msra.mxu0 0.0
    %242 = vmatprep.subr.mxu0 0.0
    %243 = vmatpush2.msra.mxu0 0.0
    %244 = vmatprep.subr.mxu0 0.0
    %245 = vmatpush2.msra.mxu0 0.0
    %246 = vmatprep.subr.mxu0 0.0
    %247 = vmatpush2.msra.mxu0 0.0
    %248 = vmatprep.subr.mxu0 0.0
    %249 = vmatpush2.msra.mxu0 0.0
    %250 = vmatprep.subr.mxu0 0.0
    %251 = vmatpush2.msra.mxu0 0.0
    %252 = vmatprep.subr.mxu0 0.0
    %253 = vmatpush2.msra.mxu0 0.0
    %254 = vmatprep.subr.mxu0 0.0
    %255 = vmatpush2.msra.mxu0 0.0
    %256 = vmatprep.mubr.f32.mxu0 0.0
    %257 = vmatmul.mubr.f32.gmra.mxu0 %v86
    %v258 = vpop.f32.mrf.mxu0
    %v259 = vadd.f32 0.0, %v258
    %v260 = vpop.f32.mrf.mxu0
    %261 = vmatprep.mubr.f32.mxu0 0.0
    %262 = vmatmul.mubr.f32.gmra.mxu0 %v89
    %v263 = vpop.f32.mrf.mxu0
    %v264 = vadd.f32 0.0, %v263
    %v265 = vpop.f32.mrf.mxu0
    %266 = vdwg.mxu0
    %267 = vmatprep.subr.mxu0 0.0
    %268 = vmatpush1.msra.mxu0 %v183
    %269 = vmatprep.subr.mxu0 0.0
    %270 = vmatpush1.msra.mxu0 %v182
    %271 = vmatprep.subr.mxu0 0.0
    %272 = vmatpush1.msra.mxu0 %v181
    %273 = vmatprep.subr.mxu0 0.0
    %274 = vmatpush1.msra.mxu0 %v180
    %275 = vmatprep.subr.mxu0 0.0
    %276 = vmatpush1.msra.mxu0 %v179
    %277 = vmatprep.subr.mxu0 0.0
    %278 = vmatpush1.msra.mxu0 %v178
    %279 = vmatprep.subr.mxu0 0.0
    %280 = vmatpush1.msra.mxu0 %v177
    %281 = vmatprep.subr.mxu0 0.0
    %282 = vmatpush1.msra.mxu0 %v176
    %283 = vmatprep.subr.mxu0 0.0
    %284 = vmatpush1.msra.mxu0 %v175
    %285 = vmatprep.subr.mxu0 0.0
    %286 = vmatpush1.msra.mxu0 %v174
    %287 = vmatprep.subr.mxu0 0.0
    %288 = vmatpush1.msra.mxu0 %v173
    %289 = vmatprep.subr.mxu0 0.0
    %290 = vmatpush1.msra.mxu0 %v172
    %291 = vmatprep.subr.mxu0 0.0
    %292 = vmatpush1.msra.mxu0 %v171
    %293 = vmatprep.subr.mxu0 0.0
    %294 = vmatpush1.msra.mxu0 %v170
    %295 = vmatprep.subr.mxu0 0.0
    %296 = vmatpush1.msra.mxu0 %v169
    %297 = vmatprep.subr.mxu0 0.0
    %298 = vmatpush1.msra.mxu0 %v168
    %299 = vmatprep.subr.mxu0 0.0
    %300 = vmatpush2.msra.mxu0 0.0
    %301 = vmatprep.subr.mxu0 0.0
    %302 = vmatpush2.msra.mxu0 0.0
    %303 = vmatprep.subr.mxu0 0.0
    %304 = vmatpush2.msra.mxu0 0.0
    %305 = vmatprep.subr.mxu0 0.0
    %306 = vmatpush2.msra.mxu0 0.0
    %307 = vmatprep.subr.mxu0 0.0
    %308 = vmatpush2.msra.mxu0 0.0
    %309 = vmatprep.subr.mxu0 0.0
    %310 = vmatpush2.msra.mxu0 0.0
    %311 = vmatprep.subr.mxu0 0.0
    %312 = vmatpush2.msra.mxu0 0.0
    %313 = vmatprep.subr.mxu0 0.0
    %314 = vmatpush2.msra.mxu0 0.0
    %315 = vmatprep.subr.mxu0 0.0
    %316 = vmatpush2.msra.mxu0 0.0
    %317 = vmatprep.subr.mxu0 0.0
    %318 = vmatpush2.msra.mxu0 0.0
    %319 = vmatprep.subr.mxu0 0.0
    %320 = vmatpush2.msra.mxu0 0.0
    %321 = vmatprep.subr.mxu0 0.0
    %322 = vmatpush2.msra.mxu0 0.0
    %323 = vmatprep.subr.mxu0 0.0
    %324 = vmatpush2.msra.mxu0 0.0
    %325 = vmatprep.subr.mxu0 0.0
    %326 = vmatpush2.msra.mxu0 0.0
    %327 = vmatprep.subr.mxu0 0.0
    %328 = vmatpush2.msra.mxu0 0.0
    %329 = vmatprep.subr.mxu0 0.0
    %330 = vmatpush2.msra.mxu0 0.0
    %331 = vmatprep.mubr.f32.mxu0 0.0
    %332 = vmatmul.mubr.f32.gmra.mxu0 %v158
    %v333 = vpop.f32.mrf.mxu0
    %v334 = vadd.f32 %v259, %v333
    %v335 = vpop.f32.mrf.mxu0
    %336 = vmatprep.mubr.f32.mxu0 0.0
    %337 = vmatmul.mubr.f32.gmra.mxu0 %v163
    %v338 = vpop.f32.mrf.mxu0
    %v339 = vadd.f32 %v264, %v338
    %v340 = vpop.f32.mrf.mxu0
    %341 = vdwg.mxu0
    %v342 = vld [vmem:[%s5] sm:$0x1]
    %v344 = vlaneseq
    %v345 = vshrl.u32 %v344, 7
    %v346 = vsub.s32 0, %v345
    %v347 = vrot.slane %v342, %v346
    %v349 = vadd.f32 %v334, %v347
    %v350 = vadd.f32 %v339, %v347
    %351 = vst [vmem:[%s6] sm:$0xff] %v349
    %352 = vst [vmem:[%s6 + $0x8] sm:$0xff] %v350
    // Predicated region
    $region38: #{_forward_impl.1} parent=1 // pred_check
      _
    $region39: #{_forward_impl.1} parent=1 // pred_check_branch
      %354 = sbr.rel (0) target = $region41
    $region40: #{_forward_impl.1} parent=1 // pred_region
      _
    $region41: #{_forward_impl.1} parent=1 // pred_fallthru
      _
    // Predicated region
    $region42: #{_forward_impl.1} parent=1 // pred_check
      _
    $region43: #{_forward_impl.1} parent=1 // pred_check_branch
      %356 = sbr.rel (0) target = $region45
    $region44: #{_forward_impl.1} parent=1 // pred_region
      %s358 = ssub.s32 256, 256
      %359 = vsyncadd [#allocation4], %s358
      %s360 = sshll.u32 [#allocation8], 4
      %s361 = int_to_ptr.vmem [resolvable:$true] %s360
      %366 = dma.vmem_to_hbm [thread:$0]  %s361, 256, %s7, [#allocation4], 128, 128, 8
    $region45: #{_forward_impl.1} parent=1 // pred_fallthru
      _
    // Predicated region
    $region46: #{_forward_impl.1} parent=1 // pred_check
      _
    $region47: #{_forward_impl.1} parent=1 // pred_check_branch
      %368 = sbr.rel (0) target = $region49
    $region48: #{_forward_impl.1} parent=1 // pred_region
      _
    $region49: #{_forward_impl.1} parent=1 // pred_fallthru
      _
    // Predicated region
    $region50: #{_forward_impl.1} parent=1 // pred_check
      _
    $region51: #{_forward_impl.1} parent=1 // pred_check_branch
      %370 = sbr.rel (0) target = $region53
    $region52: #{_forward_impl.1} parent=1 // pred_region
      %371 = dma.done [#allocation4], 256
    $region53: #{_forward_impl.1} parent=1 // pred_fallthru
      _
    %372 = vsyncpa [#allocation3], 1
    %373 = vsyncpa [#allocation6], 1
    %374 = vsyncpa [#allocation4], 1

</llo_original>
